<compile_context>
chip_gen: v7x
topology: tpu7x:2x2x1
jax: 0.10.0
libtpu: 0.0.40
codegen_flags: <defaults>
</compile_context>

<pallas_src>
import functools

import jax
import jax.numpy as jnp
import numpy as np
from jax.experimental import pallas as pl
from jax.experimental.pallas import tpu as pltpu


def _upsample_kernel(alpha_ref, x_ref, w_ref, b_ref, o_ref, xp_ref,
                     *, B_blk, H, WC, OUTC):
    """One batch-block per grid step (lane-folded layout).

    alpha_ref : (1,)              SMEM  PReLU slope (single shared parameter)
    x_ref     : (B_blk, H, WC)    VMEM  input rows, W folded into lanes with C
    w_ref     : (3*WC, OUTC)      VMEM  fused conv+PixelShuffle weights (bf16)
    b_ref     : (1, OUTC)         VMEM  bias, pre-broadcast to output columns
    o_ref     : (B_blk, H, OUTC)  VMEM  pixel-shuffled output rows
    xp_ref    : (B_blk, H+2, WC)  VMEM  scratch: H-zero-padded copy of x
    """
    # In-kernel zero padding along H.  The 1-row halos are re-zeroed every
    # step on purpose: hoisting this behind @pl.when(pl.program_id(0) == 0)
    # would be wrong on megacore parts (v7x) where the "parallel" grid axis is
    # split across TensorCores and each core has its own scratch (a core that
    # never executes step 0 would see uninitialized halos).  Cost: two 1-row
    # stores per step.
    zero_row = jnp.zeros((B_blk, 1, WC), dtype=jnp.float32)
    xp_ref[:, 0:1, :] = zero_row
    xp_ref[:, H + 1:H + 2, :] = zero_row
    xp_ref[:, 1:H + 1, :] = x_ref[...]

    # ky-im2col LHS: three overlapping (sublane-shifted) row windows of the
    # padded input, lane-concatenated into K = 3*W*C columns (ky-major), so
    # the whole 3x3 conv is ONE MXU matmul instead of three K=W*C ones.
    lhs = jnp.concatenate(
        [xp_ref[:, 0:H, :], xp_ref[:, 1:H + 1, :], xp_ref[:, 2:H + 2, :]],
        axis=-1)                                              # (B_blk, H, 3*WC)
    lhs = lhs.reshape(B_blk * H, 3 * WC).astype(w_ref.dtype)  # bf16 operands

    # Single fused matmul (M = B_blk*H, K = 3*W*C, N = 4*W*C), f32 accumulate.
    acc = jnp.dot(lhs, w_ref[...], preferred_element_type=jnp.float32)

    acc = acc + b_ref[...]                                    # (1, OUTC) bcast
    alpha = alpha_ref[0]
    acc = jnp.where(acc > 0, acc, alpha * acc)                # PReLU (shared)
    o_ref[...] = acc.reshape(B_blk, H, OUTC).astype(o_ref.dtype)


def _build_banded_weights(conv_w, conv_b, W):
    """Fold the 3x3 horizontal taps + W zero-padding + PixelShuffle(2) channel
    permutation into banded weight slabs (f32).

    conv_w : (4C, C, 3, 3) PyTorch OIHW; output channel o = c*4 + r*2 + s
             (PyTorch PixelShuffle ordering -- assumed, not checked).
    Returns:
      w_slabs : (3, W*C, 4*W*C)  one slab per vertical tap ky
      b_col   : (1, 4*W*C)
    Output column layout: col = ((r*W + w)*2 + s)*C + c, so an (H, 4*W*C) row
    block reshapes directly (row-major) to the pixel-shuffled (2H, 2W, C).
    """
    C4, C, kh, kw = conv_w.shape
    assert C4 == 4 * C and (kh, kw) == (3, 3), conv_w.shape
    # (o,i,ky,kx) -> (ky,kx,i,o); split o = c*4 + r*2 + s -> (ky,kx,i,c,r,s)
    taps = jnp.transpose(conv_w, (2, 3, 1, 0)).reshape(3, 3, C, C, 2, 2)
    taps = jnp.transpose(taps, (0, 1, 2, 4, 5, 3))               # (ky,kx,i,r,s,c)

    w_in = jnp.arange(W)[:, None]                                # input column
    w_out = jnp.arange(W)[None, :]                               # conv output column
    kx = w_in - w_out + 1                                        # horizontal tap
    valid = (kx >= 0) & (kx <= 2)                                # W-padding baked in
    kx = jnp.clip(kx, 0, 2)

    band = taps[:, kx]                                           # (ky,w_in,w_out,i,r,s,c)
    band = band * valid[None, :, :, None, None, None, None].astype(band.dtype)
    band = jnp.transpose(band, (0, 1, 3, 4, 2, 5, 6))            # (ky,w_in,i,r,w_out,s,c)
    w_slabs = band.reshape(3, W * C, 4 * W * C)

    b = jnp.transpose(conv_b.reshape(C, 2, 2), (1, 2, 0))        # (r, s, c)
    b_col = jnp.broadcast_to(b[:, None, :, :], (2, W, 2, C)).reshape(1, 4 * W * C)
    return w_slabs, b_col


def prepare_params(conv_w, conv_b, W, weight_dtype=jnp.bfloat16):
    """Precompute the fused (3*W*C, 4*W*C) weight matrix and bias row ONCE.

    Hoisted out of the jitted forward (per review): it is a per-model constant
    and its O((W*C)^2) build should not run every call.
    """
    w_slabs, b_col = _build_banded_weights(
        jnp.asarray(conv_w, jnp.float32), jnp.asarray(conv_b, jnp.float32), W)
    C = conv_w.shape[1]
    # K layout is ky-major (ky, w_in, c_in): matches the kernel's lane concat.
    w_mat = w_slabs.reshape(3 * W * C, 4 * W * C).astype(weight_dtype)
    return w_mat, b_col.astype(jnp.float32)


def _choose_batch_block(N, H):
    """How many images to fold into the matmul M dimension per grid step.

    Target M = B_blk*H ~ 256 (fills v6e/v7x MXU rows), but keep >= 2 grid
    steps when the batch allows it so both v7x TensorCores get work.  On
    v5e/v6e (1 TC) the per-step overhead of the extra step is negligible here.
    """
    b_blk = max(1, min(N, 256 // max(H, 1)))
    if N >= 2:
        b_blk = min(b_blk, max(1, N // 2))
    while N % b_blk:
        b_blk -= 1
    return b_blk


@jax.jit
def upsampling_block(x_nchw, w_mat, b_col, prelu_alpha):
    """UpSamplingBlock forward.

    x_nchw : (N, C, H, W) f32; w_mat/b_col from prepare_params(conv_w, conv_b, W);
    prelu_alpha : () f32.  Returns (N, C, 2H, 2W) f32 (matches PyTorch).
    """
    N, C, H, W = x_nchw.shape
    WC = W * C
    OUTC = 4 * WC
    if WC % 32 != 0:
        # Lane-dense unmasked stores need the output last dim (4*W*C) to be a
        # multiple of 128; pad C or W upstream if this ever trips.
        raise ValueError(f"W*C = {WC} must be a multiple of 32")
    assert w_mat.shape == (3 * WC, OUTC), w_mat.shape
    assert b_col.shape == (1, OUTC), b_col.shape

    B_blk = _choose_batch_block(N, H)
    n_steps = N // B_blk

    # Input glue: single NCHW->NHWC transpose, then a free lane-fold reshape.
    x_rows = jnp.transpose(x_nchw, (0, 2, 3, 1)).reshape(N, H, WC)
    alpha = jnp.reshape(prelu_alpha, (1,)).astype(jnp.float32)

    kernel = functools.partial(_upsample_kernel, B_blk=B_blk, H=H, WC=WC, OUTC=OUTC)

    y = pl.pallas_call(
        kernel,
        out_shape=jax.ShapeDtypeStruct((N, H, OUTC), jnp.float32),
        grid_spec=pltpu.PrefetchScalarGridSpec(
            num_scalar_prefetch=0,
            grid=(n_steps,),
            in_specs=[
                pl.BlockSpec(memory_space=pltpu.MemorySpace.SMEM),     # alpha
                pl.BlockSpec((B_blk, H, WC), lambda n: (n, 0, 0)),     # x rows
                # Constant blocks (index never changes -> DMA'd once).
                # TODO(synk): pipeline_mode=pl.Buffered(1) on these when W*C
                # grows toward the v7x VMEM ceiling.
                pl.BlockSpec((3 * WC, OUTC), lambda n: (0, 0)),        # fused weights
                pl.BlockSpec((1, OUTC), lambda n: (0, 0)),             # bias
            ],
            out_specs=pl.BlockSpec((B_blk, H, OUTC), lambda n: (n, 0, 0)),
            scratch_shapes=[pltpu.VMEM((B_blk, H + 2, WC), jnp.float32)],
        ),
        compiler_params=pltpu.CompilerParams(
            dimension_semantics=("parallel",),
            vmem_limit_bytes=32 * 1024 * 1024,      # tiny tiles; safe on v5e/v6e/v7x
        ),
    )(alpha, x_rows, w_mat, b_col)

    # Output glue: PixelShuffle is already encoded in the column layout, so
    # this is a pure reshape, followed by the single NHWC->NCHW transpose.
    out_nhwc = y.reshape(N, 2 * H, 2 * W, C)
    return jnp.transpose(out_nhwc, (0, 3, 1, 2))


def _reference(x_nchw, conv_w, conv_b, prelu_alpha):
    """Pure-JAX f32 reference mirroring the PyTorch module."""
    y = jax.lax.conv_general_dilated(
        x_nchw, conv_w, window_strides=(1, 1), padding=((1, 1), (1, 1)),
        dimension_numbers=("NCHW", "OIHW", "NCHW"),
        precision=jax.lax.Precision.HIGHEST)
    y = y + conv_b[None, :, None, None]
    N, C4, H, W = y.shape
    C = C4 // 4
    y = y.reshape(N, C, 2, 2, H, W)
    y = jnp.transpose(y, (0, 1, 4, 2, 5, 3)).reshape(N, C, 2 * H, 2 * W)
    return jnp.where(y > 0, y, prelu_alpha * y)


if __name__ == "__main__":
    key = jax.random.PRNGKey(0)
    k_x, k_w, k_b = jax.random.split(key, 3)

    N, C, H, W = 2, 4, 16, 16          # config.n_filters = 4
    x = jax.random.normal(k_x, (N, C, H, W), dtype=jnp.float32)

    # Deterministic parameter init (shapes from the module's __init__).
    fan_in = C * 3 * 3
    bound = 1.0 / np.sqrt(fan_in)
    conv_w = jax.random.uniform(k_w, (4 * C, C, 3, 3), jnp.float32, -bound, bound)
    conv_b = jax.random.uniform(k_b, (4 * C,), jnp.float32, -bound, bound)
    prelu_alpha = jnp.float32(0.25)    # torch.nn.PReLU() default init

    # Fused weight/bias build runs ONCE, outside the jitted forward.
    w_mat, b_col = prepare_params(conv_w, conv_b, W)

    out = jax.block_until_ready(upsampling_block(x, w_mat, b_col, prelu_alpha))
    ref = jax.block_until_ready(_reference(x, conv_w, conv_b, prelu_alpha))

    assert out.shape == (N, C, 2 * H, 2 * W)
    # bf16 matmul operands (f32 accumulate) vs the f32 HIGHEST reference.
    np.testing.assert_allclose(np.asarray(out), np.asarray(ref), atol=2e-2, rtol=2e-2)

    print("KERNEL_OK")
</pallas_src>

<mosaic_0001>
module attributes {stable_mosaic.version = 11 : i64} {
  func.func @_upsample_kernel(%arg0: i32, %arg1: memref<1xf32, #tpu.memory_space<smem>>, %arg2: memref<1x16x64xf32, #tpu.memory_space<vmem>>, %arg3: memref<192x256xbf16, #tpu.memory_space<vmem>>, %arg4: memref<1x256xf32, #tpu.memory_space<vmem>>, %arg5: memref<1x16x256xf32, #tpu.memory_space<vmem>>, %arg6: memref<1x18x64xf32, #tpu.memory_space<vmem>>) attributes {dimension_semantics = [#tpu.dimension_semantics<parallel>], iteration_bounds = array<i64: 2>, scalar_prefetch = 0 : i64, scratch_operands = 1 : i64, tpu.core_type = #tpu.core_type<tc>, window_params = [{transform_indices = @transform_0, window_bounds = array<i64: 1>}, {transform_indices = @transform_1, window_bounds = array<i64: 1, 16, 64>}, {pipeline_mode = #tpu.pipeline_mode<synchronous>, transform_indices = @transform_2, window_bounds = array<i64: 192, 256>}, {pipeline_mode = #tpu.pipeline_mode<synchronous>, transform_indices = @transform_3, window_bounds = array<i64: 1, 256>}, {transform_indices = @transform_4, window_bounds = array<i64: 1, 16, 256>}]} {
    %cst = arith.constant 0.000000e+00 : f32
    %0 = vector.broadcast %cst : f32 to vector<1x1x64xf32>
    %c0 = arith.constant 0 : index
    %c0_0 = arith.constant 0 : index
    %c0_1 = arith.constant 0 : index
    %1 = vector.load %arg6[%c0, %c0_0, %c0_1] : memref<1x18x64xf32, #tpu.memory_space<vmem>>, vector<1x1x64xf32>
    tpu.vector_store %arg6[%c0, %c0_0, %c0_1], %0 {strides = array<i32>} : memref<1x18x64xf32, #tpu.memory_space<vmem>>, vector<1x1x64xf32>,
    %c0_2 = arith.constant 0 : index
    %c17 = arith.constant 17 : index
    %c0_3 = arith.constant 0 : index
    %2 = vector.load %arg6[%c0_2, %c17, %c0_3] : memref<1x18x64xf32, #tpu.memory_space<vmem>>, vector<1x1x64xf32>
    tpu.vector_store %arg6[%c0_2, %c17, %c0_3], %0 {strides = array<i32>} : memref<1x18x64xf32, #tpu.memory_space<vmem>>, vector<1x1x64xf32>,
    %c0_4 = arith.constant 0 : index
    %c0_5 = arith.constant 0 : index
    %c0_6 = arith.constant 0 : index
    %3 = vector.load %arg2[%c0_4, %c0_5, %c0_6] : memref<1x16x64xf32, #tpu.memory_space<vmem>>, vector<1x16x64xf32>
    %c0_7 = arith.constant 0 : index
    %c1 = arith.constant 1 : index
    %c0_8 = arith.constant 0 : index
    %4 = vector.load %arg6[%c0_7, %c1, %c0_8] : memref<1x18x64xf32, #tpu.memory_space<vmem>>, vector<1x16x64xf32>
    tpu.vector_store %arg6[%c0_7, %c1, %c0_8], %3 {strides = array<i32>} : memref<1x18x64xf32, #tpu.memory_space<vmem>>, vector<1x16x64xf32>,
    %c0_9 = arith.constant 0 : index
    %c0_10 = arith.constant 0 : index
    %c0_11 = arith.constant 0 : index
    %5 = vector.load %arg6[%c0_9, %c0_10, %c0_11] : memref<1x18x64xf32, #tpu.memory_space<vmem>>, vector<1x16x64xf32>
    %c0_12 = arith.constant 0 : index
    %c1_13 = arith.constant 1 : index
    %c0_14 = arith.constant 0 : index
    %6 = vector.load %arg6[%c0_12, %c1_13, %c0_14] : memref<1x18x64xf32, #tpu.memory_space<vmem>>, vector<1x16x64xf32>
    %c0_15 = arith.constant 0 : index
    %c2 = arith.constant 2 : index
    %c0_16 = arith.constant 0 : index
    %7 = vector.load %arg6[%c0_15, %c2, %c0_16] : memref<1x18x64xf32, #tpu.memory_space<vmem>>, vector<1x16x64xf32>
    %8 = tpu.concatenate %5, %6, %7 in 2 : vector<1x16x64xf32>, vector<1x16x64xf32>, vector<1x16x64xf32> -> vector<1x16x192xf32>
    %9 = vector.shape_cast %8 : vector<1x16x192xf32> to vector<16x192xf32>
    %10 = arith.truncf %9 : vector<16x192xf32> to vector<16x192xbf16>
    %c0_17 = arith.constant 0 : index
    %c0_18 = arith.constant 0 : index
    %11 = vector.load %arg3[%c0_17, %c0_18] : memref<192x256xbf16, #tpu.memory_space<vmem>>, vector<192x256xbf16>
    %cst_19 = arith.constant dense<0.000000e+00> : vector<16x256xf32>
    %12 = tpu.matmul %10, %11, %cst_19 {dimension_numbers = #tpu.dot_dimension_numbers<[1], [0], [0], [1], [0, 0, 1, 1], [], []>} : vector<16x192xbf16>, vector<192x256xbf16>, vector<16x256xf32> -> vector<16x256xf32>
    %c0_20 = arith.constant 0 : index
    %c0_21 = arith.constant 0 : index
    %13 = vector.load %arg4[%c0_20, %c0_21] : memref<1x256xf32, #tpu.memory_space<vmem>>, vector<1x256xf32>
    %14 = vector.broadcast %13 : vector<1x256xf32> to vector<16x256xf32>
    %15 = arith.addf %12, %14 : vector<16x256xf32>
    %c0_22 = arith.constant 0 : index
    %16 = memref.load %arg1[%c0_22] : memref<1xf32, #tpu.memory_space<smem>>
    %cst_23 = arith.constant 0.000000e+00 : f32
    %17 = vector.broadcast %cst_23 : f32 to vector<16x256xf32>
    %18 = arith.cmpf ogt, %15, %17 : vector<16x256xf32>
    %19 = vector.broadcast %16 : f32 to vector<16x256xf32>
    %20 = arith.mulf %19, %15 : vector<16x256xf32>
    %21 = arith.select %18, %15, %20 : vector<16x256xi1>, vector<16x256xf32>
    %22 = vector.shape_cast %21 : vector<16x256xf32> to vector<1x16x256xf32>
    %c0_24 = arith.constant 0 : index
    %c0_25 = arith.constant 0 : index
    %c0_26 = arith.constant 0 : index
    %23 = vector.load %arg5[%c0_24, %c0_25, %c0_26] : memref<1x16x256xf32, #tpu.memory_space<vmem>>, vector<1x16x256xf32>
    tpu.vector_store %arg5[%c0_24, %c0_25, %c0_26], %22 {strides = array<i32>} : memref<1x16x256xf32, #tpu.memory_space<vmem>>, vector<1x16x256xf32>,
    return
  }
  func.func @transform_0(%arg0: i32) -> i32 {
    %c0_i32 = arith.constant 0 : i32
    %c0_i32_0 = arith.constant 0 : i32
    return %c0_i32 : i32
  }
  func.func @transform_1(%arg0: i32) -> (i32, i32, i32) {
    %c0_i32 = arith.constant 0 : i32
    %c0_i32_0 = arith.constant 0 : i32
    %c0_i32_1 = arith.constant 0 : i32
    return %arg0, %c0_i32, %c0_i32_0 : i32, i32, i32
  }
  func.func @transform_2(%arg0: i32) -> (i32, i32) {
    %c0_i32 = arith.constant 0 : i32
    %c0_i32_0 = arith.constant 0 : i32
    %c0_i32_1 = arith.constant 0 : i32
    return %c0_i32, %c0_i32_0 : i32, i32
  }
  func.func @transform_3(%arg0: i32) -> (i32, i32) {
    %c0_i32 = arith.constant 0 : i32
    %c0_i32_0 = arith.constant 0 : i32
    %c0_i32_1 = arith.constant 0 : i32
    return %c0_i32, %c0_i32_0 : i32, i32
  }
  func.func @transform_4(%arg0: i32) -> (i32, i32, i32) {
    %c0_i32 = arith.constant 0 : i32
    %c0_i32_0 = arith.constant 0 : i32
    %c0_i32_1 = arith.constant 0 : i32
    return %arg0, %c0_i32, %c0_i32_0 : i32, i32, i32
  }
}

</mosaic_0001>

<llo_original>
// kernel: upsampling_block.1
$region0: #{upsampling_block.1}
  #allocation0 [shape = 'u32[]', space=smem, size = 0x4, offset = 0x4, fixed_abs, tag = 'smem constant byte address 0x4 - core index']
  #allocation1 [shape = 'u32[144,128]{1,0:T(1,128)}', space=vmem, size = 0x12000, scoped, tag = 'internal scratch']
  #allocation2 [shape = 'f32[1,18,64]{2,1,0:T(8,128)}', space=vmem, size = 0x3000, scoped, tag = 'scratch operand']
  #allocation3 [shape = 'f32[1]{0:T(128)S(6)}', space=smem, size = 0x200, scoped, tag = 'scoped memory for upsampling_block.1']
  %s0 = inlined_call_operand.<no memory space> [shape: f32[1], index: 0, kind: input, shape index: {}]
  %s1 = inlined_call_operand.vmem [shape: f32[2,16,64], index: 1, kind: input, shape index: {}]
  %s2 = inlined_call_operand.vmem [shape: bf16[192,256], index: 2, kind: input, shape index: {}]
  %s3 = inlined_call_operand.vmem [shape: f32[1,256], index: 3, kind: input, shape index: {}]
  %s4 = inlined_call_operand.vmem [shape: f32[2,16,256], index: 4, kind: output, shape index: {}]
  %s5 = sld [smem:[#allocation0]]
  $region49: #{upsampling_block.1} parent=0
    _
  %s7 = ssub.s32 1, %s5
  %s8 = scalar_select 0, %s7, %s5
  %9 = sst [smem:[#allocation3]] %s0
  loop: start=0, step=1, limit=4
  $region2: #{upsampling_block.1} parent=0 // loop_pre_header
    _
  $region3: #{upsampling_block.1} parent=0 // loop_header
    %s11 = sphi 0, %s15
    %p12 = scmp.ge.s32.totalorder %s11, 4
    %s19 = sphi 0, %s19
    %s21 = sphi 0, %s19
    %s22 = sphi 0, %s21
    %s36 = sphi 0, %s22
    %s42 = sphi 0, %s44
    %s45 = sphi 0, %s42
    %s46 = sphi 0, %s45
    %s62 = sphi 0, %s46
    %s66 = sphi 0, %s66
    %s68 = sphi 0, %s66
    %s69 = sphi 0, %s68
    %s83 = sphi 0, %s69
    %s87 = sphi 0, %s87
    %s89 = sphi 0, %s87
    %s90 = sphi 0, %s89
    %s104 = sphi 0, %s90
    %s110 = sphi 0, %s112
    %s113 = sphi 0, %s110
    %s114 = sphi 0, %s113
    %s130 = sphi 0, %s114
  $region4: #{upsampling_block.1} parent=0 // loop_header_branch
    %14 = sbr.rel (%p12) target = $region8
  $region5: #{upsampling_block.1} parent=0 // loop_body
    %s16 = ssub.s32 %s11, 1
    %s17 = ssub.s32 %s11, 2
    %s18 = sadd.s32 %s11, 1
    %s20 = sadd.s32 %s19, 1
    %p23 = scmp.eq.s32.totalorder %s11, 1
    %p24 = scmp.ne.s32.totalorder %s19, %s21
    %p25 = scmp.eq.s32.totalorder %s11, 0
    %p26 = por %p24, %p25
    %p27 = scmp.ne.s32.totalorder %s19, %s21
    %p28 = scmp.eq.s32.totalorder %s16, 1
    %p29 = por %p27, %p28
    %p30 = scmp.ne.s32.totalorder %s21, %s22
    %p31 = scmp.eq.s32.totalorder %s16, 0
    %p32 = por %p30, %p31
    %p33 = scmp.ne.s32.totalorder %s21, %s22
    %p34 = scmp.eq.s32.totalorder %s17, 1
    %p35 = por %p33, %p34
    %p37 = scmp.ne.s32.totalorder %s22, %s36
    %p38 = scmp.eq.s32.totalorder %s17, 0
    %p39 = por %p37, %p38
    %s40 = ssub.s32 %s11, %s18
    %p41 = scmp.eq.s32.totalorder %s40, 0
    %s43 = sadd.s32 %s42, 1
    %s44 = scalar_select %p41, %s42, %s43
    %p47 = pneg %p41
    %p48 = scmp.eq.s32.totalorder %s11, 1
    %p49 = por %p47, %p48
    %p50 = scmp.ne.s32.totalorder %s42, %s45
    %p51 = scmp.eq.s32.totalorder %s11, 0
    %p52 = por %p50, %p51
    %p53 = scmp.ne.s32.totalorder %s42, %s45
    %p54 = scmp.eq.s32.totalorder %s16, 1
    %p55 = por %p53, %p54
    %p56 = scmp.ne.s32.totalorder %s45, %s46
    %p57 = scmp.eq.s32.totalorder %s16, 0
    %p58 = por %p56, %p57
    %p59 = scmp.ne.s32.totalorder %s45, %s46
    %p60 = scmp.eq.s32.totalorder %s17, 1
    %p61 = por %p59, %p60
    %p63 = scmp.ne.s32.totalorder %s46, %s62
    %p64 = scmp.eq.s32.totalorder %s17, 0
    %p65 = por %p63, %p64
    %s67 = sadd.s32 %s66, 1
    %p70 = scmp.eq.s32.totalorder %s11, 1
    %p71 = scmp.ne.s32.totalorder %s66, %s68
    %p72 = scmp.eq.s32.totalorder %s11, 0
    %p73 = por %p71, %p72
    %p74 = scmp.ne.s32.totalorder %s66, %s68
    %p75 = scmp.eq.s32.totalorder %s16, 1
    %p76 = por %p74, %p75
    %p77 = scmp.ne.s32.totalorder %s68, %s69
    %p78 = scmp.eq.s32.totalorder %s16, 0
    %p79 = por %p77, %p78
    %p80 = scmp.ne.s32.totalorder %s68, %s69
    %p81 = scmp.eq.s32.totalorder %s17, 1
    %p82 = por %p80, %p81
    %p84 = scmp.ne.s32.totalorder %s69, %s83
    %p85 = scmp.eq.s32.totalorder %s17, 0
    %p86 = por %p84, %p85
    %s88 = sadd.s32 %s87, 1
    %p91 = scmp.eq.s32.totalorder %s11, 1
    %p92 = scmp.ne.s32.totalorder %s87, %s89
    %p93 = scmp.eq.s32.totalorder %s11, 0
    %p94 = por %p92, %p93
    %p95 = scmp.ne.s32.totalorder %s87, %s89
    %p96 = scmp.eq.s32.totalorder %s16, 1
    %p97 = por %p95, %p96
    %p98 = scmp.ne.s32.totalorder %s89, %s90
    %p99 = scmp.eq.s32.totalorder %s16, 0
    %p100 = por %p98, %p99
    %p101 = scmp.ne.s32.totalorder %s89, %s90
    %p102 = scmp.eq.s32.totalorder %s17, 1
    %p103 = por %p101, %p102
    %p105 = scmp.ne.s32.totalorder %s90, %s104
    %p106 = scmp.eq.s32.totalorder %s17, 0
    %p107 = por %p105, %p106
    %s108 = ssub.s32 %s11, %s18
    %p109 = scmp.eq.s32.totalorder %s108, 0
    %s111 = sadd.s32 %s110, 1
    %s112 = scalar_select %p109, %s110, %s111
    %p115 = pneg %p109
    %p116 = scmp.eq.s32.totalorder %s11, 1
    %p117 = por %p115, %p116
    %p118 = scmp.ne.s32.totalorder %s110, %s113
    %p119 = scmp.eq.s32.totalorder %s11, 0
    %p120 = por %p118, %p119
    %p121 = scmp.ne.s32.totalorder %s110, %s113
    %p122 = scmp.eq.s32.totalorder %s16, 1
    %p123 = por %p121, %p122
    %p124 = scmp.ne.s32.totalorder %s113, %s114
    %p125 = scmp.eq.s32.totalorder %s16, 0
    %p126 = por %p124, %p125
    %p127 = scmp.ne.s32.totalorder %s113, %s114
    %p128 = scmp.eq.s32.totalorder %s17, 1
    %p129 = por %p127, %p128
    %p131 = scmp.ne.s32.totalorder %s114, %s130
    %p132 = scmp.eq.s32.totalorder %s17, 0
    %p133 = por %p131, %p132
    %p134 = scmp.le.s32.totalorder 1, %s11
    %p135 = scmp.lt.s32.totalorder %s11, 3
    %p136 = pnand %p134, %p135
    %p137 = pneg %p136
    // Predicated region
    $region9: #{upsampling_block.1} parent=5 // pred_check
      _
    $region10: #{upsampling_block.1} parent=5 // pred_check_branch
      %139 = sbr.rel (%p136) target = $region12
    $region11: #{upsampling_block.1} parent=5 // pred_region
      %s140 = ssub.s32 %s11, 1
      // Predicated region
      $region13: #{upsampling_block.1} parent=11 // pred_check
        %p141 = pneg %p32
      $region14: #{upsampling_block.1} parent=11 // pred_check_branch
        %143 = sbr.rel (%p141) target = $region16
      $region15: #{upsampling_block.1} parent=11 // pred_region
        _
      $region16: #{upsampling_block.1} parent=11 // pred_fallthru
        _
      // Predicated region
      $region17: #{upsampling_block.1} parent=11 // pred_check
        %p144 = pneg %p79
      $region18: #{upsampling_block.1} parent=11 // pred_check_branch
        %146 = sbr.rel (%p144) target = $region20
      $region19: #{upsampling_block.1} parent=11 // pred_region
        _
      $region20: #{upsampling_block.1} parent=11 // pred_fallthru
        _
      // Predicated region
      $region21: #{upsampling_block.1} parent=11 // pred_check
        %p147 = pneg %p100
      $region22: #{upsampling_block.1} parent=11 // pred_check_branch
        %149 = sbr.rel (%p147) target = $region24
      $region23: #{upsampling_block.1} parent=11 // pred_region
        _
      $region24: #{upsampling_block.1} parent=11 // pred_fallthru
        _
    $region12: #{upsampling_block.1} parent=5 // pred_fallthru
      _
    %p150 = scmp.lt.s32.totalorder %s11, 2
    // Predicated region
    $region25: #{upsampling_block.1} parent=5 // pred_check
      %p151 = pneg %p150
    $region26: #{upsampling_block.1} parent=5 // pred_check_branch
      %153 = sbr.rel (%p151) target = $region28
    $region27: #{upsampling_block.1} parent=5 // pred_region
      // Predicated region
      $region29: #{upsampling_block.1} parent=27 // pred_check
        %p154 = pneg %p52
      $region30: #{upsampling_block.1} parent=27 // pred_check_branch
        %156 = sbr.rel (%p154) target = $region32
      $region31: #{upsampling_block.1} parent=27 // pred_region
        %p157 = scmp.lt.s32.totalorder %s11, 1
        %s158 = scalar_select %p157, %s11, 1
        %s159 = smul.addr %s158, 2
        %s160 = smul.addr %s159, 8
        %s161 = scalar_lea.vmem %s1, %s160
      $region32: #{upsampling_block.1} parent=27 // pred_fallthru
        _
    $region28: #{upsampling_block.1} parent=5 // pred_fallthru
      _
    %p162 = scmp.le.s32.totalorder 1, %s11
    %p163 = scmp.lt.s32.totalorder %s11, 3
    %p164 = pnand %p162, %p163
    %p165 = pneg %p164
    // Predicated region
    $region33: #{upsampling_block.1} parent=5 // pred_check
      _
    $region34: #{upsampling_block.1} parent=5 // pred_check_branch
      %167 = sbr.rel (%p164) target = $region36
    $region35: #{upsampling_block.1} parent=5 // pred_region
      %s168 = ssub.s32 %s11, 1
      %p169 = pneg %p32
      %p170 = pneg %p29
      %p171 = scmp.lt.s32.totalorder %s16, 1
      %s172 = scalar_select %p171, %s16, 1
      %s173 = smul.addr %s172, 2
      %s174 = smul.addr %s173, 8
      %s175 = scalar_lea.vmem %s1, %s174
      %p176 = pneg %p58
      %p177 = pneg %p55
      %p178 = pneg %p79
      %p179 = pneg %p76
      %p180 = pneg %p100
      %p181 = pneg %p97
      %p182 = pneg %p126
      %p183 = pneg %p123
      %p184 = scmp.lt.s32.totalorder %s16, 1
      %s185 = scalar_select %p184, %s16, 1
      %s186 = smul.addr %s185, 4
      %s187 = smul.addr %s186, 8
      %s188 = scalar_lea.vmem %s4, %s187
      %p189 = scmp.lt.s32.totalorder %s16, 1
      %s190 = scalar_select %p189, %s16, 1
      %s191 = smul.addr %s190, 2
      %s192 = smul.addr %s191, 8
      %s193 = scalar_lea.vmem %s1, %s192
      %p194 = scmp.lt.s32.totalorder %s16, 1
      %s195 = scalar_select %p194, %s16, 1
      %s196 = smul.addr %s195, 4
      %s197 = smul.addr %s196, 8
      %s198 = scalar_lea.vmem %s4, %s197
      %vm200 = vcmask 516096
      %201 = vst.msk [vmem:[#allocation2] sm:$0x1] %vm200, 0.0
      %202 = vst.msk [vmem:[#allocation2 + $0x11] sm:$0x1] %vm200, 0.0
      %v203 = vld [vmem:[%s193] sm:$0xff]
      %v204 = vld [vmem:[%s193 + $0x8] sm:$0xff]
      %vm205 = vcmask 523264
      %206 = vst.msk [vmem:[#allocation2 + $0x1] sm:$0xff] %vm205, %v203
      %207 = vst.msk [vmem:[#allocation2 + $0x9] sm:$0xff] %vm205, %v204
      %v208 = vld [vmem:[#allocation2] sm:$0xff]
      %v209 = vld [vmem:[#allocation2 + $0x8] sm:$0xff]
      %v210 = vld [vmem:[#allocation2 + $0x1] sm:$0xff]
      %v211 = vld [vmem:[#allocation2 + $0x9] sm:$0xff]
      %v212 = vld [vmem:[#allocation2 + $0x2] sm:$0xff]
      %v213 = vld [vmem:[#allocation2 + $0xa] sm:$0xff]
      %216 = vrot.lane.b32.xlu0 %v210, 64
      %v217 = vpop.permute.xlu0 %216
      %218 = vrot.lane.b32.xlu0 %v211, 64
      %v219 = vpop.permute.xlu0 %218
      %v222 = vsel %vm205, %v208, %v217
      %v223 = vsel %vm205, %v209, %v219
      %v224 = vpack.c.bf16 %v223, %v222
      %v225 = vpack.c.bf16 %v213, %v212
      %v226 = vld [vmem:[%s2] sm:$0xff]
      %v227 = vld [vmem:[%s2 + $0x8] sm:$0xff]
      %v228 = vld [vmem:[%s2 + $0x10] sm:$0xff]
      %v229 = vld [vmem:[%s2 + $0x18] sm:$0xff]
      %v230 = vld [vmem:[%s2 + $0x20] sm:$0xff]
      %v231 = vld [vmem:[%s2 + $0x28] sm:$0xff]
      %v232 = vld [vmem:[%s2 + $0x30] sm:$0xff]
      %v233 = vld [vmem:[%s2 + $0x38] sm:$0xff]
      %v234 = vld [vmem:[%s2 + $0x40] sm:$0xff]
      %v235 = vld [vmem:[%s2 + $0x48] sm:$0xff]
      %v236 = vld [vmem:[%s2 + $0x50] sm:$0xff]
      %v237 = vld [vmem:[%s2 + $0x58] sm:$0xff]
      %v238 = vld [vmem:[%s2 + $0x60] sm:$0xff]
      %v239 = vld [vmem:[%s2 + $0x68] sm:$0xff]
      %v240 = vld [vmem:[%s2 + $0x70] sm:$0xff]
      %v241 = vld [vmem:[%s2 + $0x78] sm:$0xff]
      %v242 = vld [vmem:[%s2 + $0x80] sm:$0xff]
      %v243 = vld [vmem:[%s2 + $0x88] sm:$0xff]
      %v244 = vld [vmem:[%s2 + $0x90] sm:$0xff]
      %v245 = vld [vmem:[%s2 + $0x98] sm:$0xff]
      %v246 = vld [vmem:[%s2 + $0xa0] sm:$0xff]
      %v247 = vld [vmem:[%s2 + $0xa8] sm:$0xff]
      %v248 = vld [vmem:[%s2 + $0xb0] sm:$0xff]
      %v249 = vld [vmem:[%s2 + $0xb8] sm:$0xff]
      %v250 = vld [vmem:[%s3] sm:$0x3]
      %v252 = vlaneseq
      %v253 = vshrl.u32 %v252, 7
      %v254 = vsub.s32 0, %v253
      %v255 = vrot.slane %v250, %v254
      %v256 = vlaneseq
      %v257 = vshrl.u32 %v256, 7
      %v258 = vsub.s32 1, %v257
      %v259 = vrot.slane %v250, %v258
      %v286 = vunpack.c.l.b16 %v226
      %v287 = vunpack.c.h.b16 %v226
      %v288 = vunpack.c.l.b16 %v227
      %v289 = vunpack.c.h.b16 %v227
      %v290 = vunpack.c.l.b16 %v228
      %v291 = vunpack.c.h.b16 %v228
      %v292 = vunpack.c.l.b16 %v229
      %v293 = vunpack.c.h.b16 %v229
      %v294 = vunpack.c.l.b16 %v230
      %v295 = vunpack.c.h.b16 %v230
      %v296 = vunpack.c.l.b16 %v231
      %v297 = vunpack.c.h.b16 %v231
      %v298 = vunpack.c.l.b16 %v232
      %v299 = vunpack.c.h.b16 %v232
      %v300 = vunpack.c.l.b16 %v233
      %v301 = vunpack.c.h.b16 %v233
      %v302 = vunpack.c.l.b16 %v234
      %v303 = vunpack.c.h.b16 %v234
      %v304 = vunpack.c.l.b16 %v235
      %v305 = vunpack.c.h.b16 %v235
      %v306 = vunpack.c.l.b16 %v236
      %v307 = vunpack.c.h.b16 %v236
      %v308 = vunpack.c.l.b16 %v237
      %v309 = vunpack.c.h.b16 %v237
      %v310 = vunpack.c.l.b16 %v238
      %v311 = vunpack.c.h.b16 %v238
      %v312 = vunpack.c.l.b16 %v239
      %v313 = vunpack.c.h.b16 %v239
      %v314 = vunpack.c.l.b16 %v240
      %v315 = vunpack.c.h.b16 %v240
      %v316 = vunpack.c.l.b16 %v241
      %v317 = vunpack.c.h.b16 %v241
      %v318 = vunpack.c.l.b16 %v242
      %v319 = vunpack.c.h.b16 %v242
      %v320 = vunpack.c.l.b16 %v243
      %v321 = vunpack.c.h.b16 %v243
      %v322 = vunpack.c.l.b16 %v244
      %v323 = vunpack.c.h.b16 %v244
      %v324 = vunpack.c.l.b16 %v245
      %v325 = vunpack.c.h.b16 %v245
      %v326 = vunpack.c.l.b16 %v246
      %v327 = vunpack.c.h.b16 %v246
      %v328 = vunpack.c.l.b16 %v247
      %v329 = vunpack.c.h.b16 %v247
      %v330 = vunpack.c.l.b16 %v248
      %v331 = vunpack.c.h.b16 %v248
      %v332 = vunpack.c.l.b16 %v249
      %v333 = vunpack.c.h.b16 %v249
      %v334 = vpack.c.b16 %v288, %v286
      %v335 = vpack.c.b16 %v289, %v287
      %v336 = vpack.c.b16 %v292, %v290
      %v337 = vpack.c.b16 %v293, %v291
      %v338 = vpack.c.b16 %v296, %v294
      %v339 = vpack.c.b16 %v297, %v295
      %v340 = vpack.c.b16 %v300, %v298
      %v341 = vpack.c.b16 %v301, %v299
      %v342 = vpack.c.b16 %v304, %v302
      %v343 = vpack.c.b16 %v305, %v303
      %v344 = vpack.c.b16 %v308, %v306
      %v345 = vpack.c.b16 %v309, %v307
      %v346 = vpack.c.b16 %v312, %v310
      %v347 = vpack.c.b16 %v313, %v311
      %v348 = vpack.c.b16 %v316, %v314
      %v349 = vpack.c.b16 %v317, %v315
      %v350 = vpack.c.b16 %v320, %v318
      %v351 = vpack.c.b16 %v321, %v319
      %v352 = vpack.c.b16 %v324, %v322
      %v353 = vpack.c.b16 %v325, %v323
      %v354 = vpack.c.b16 %v328, %v326
      %v355 = vpack.c.b16 %v329, %v327
      %v356 = vpack.c.b16 %v332, %v330
      %v357 = vpack.c.b16 %v333, %v331
      %v383 = vsel %vm205, %v225, 0
      %385 = vmatprep.subr.bf16.mxu0 %v335
      %386 = vmatpush1.bf16.msra.mxu0 %v334
      %387 = vmatprep.subr.bf16.mxu0 %v337
      %388 = vmatpush1.bf16.msra.mxu0 %v336
      %389 = vmatprep.subr.bf16.mxu0 %v339
      %390 = vmatpush1.bf16.msra.mxu0 %v338
      %391 = vmatprep.subr.bf16.mxu0 %v341
      %392 = vmatpush1.bf16.msra.mxu0 %v340
      %393 = vmatprep.subr.bf16.mxu0 %v343
      %394 = vmatpush1.bf16.msra.mxu0 %v342
      %395 = vmatprep.subr.bf16.mxu0 %v345
      %396 = vmatpush1.bf16.msra.mxu0 %v344
      %397 = vmatprep.subr.bf16.mxu0 %v347
      %398 = vmatpush1.bf16.msra.mxu0 %v346
      %399 = vmatprep.subr.bf16.mxu0 %v349
      %400 = vmatpush1.bf16.msra.mxu0 %v348
      %401 = vmatprep.subr.bf16.mxu0 %v351
      %402 = vmatpush1.bf16.msra.mxu0 %v350
      %403 = vmatprep.subr.bf16.mxu0 %v353
      %404 = vmatpush1.bf16.msra.mxu0 %v352
      %405 = vmatprep.subr.bf16.mxu0 %v355
      %406 = vmatpush1.bf16.msra.mxu0 %v354
      %407 = vmatprep.subr.bf16.mxu0 %v357
      %408 = vmatpush1.bf16.msra.mxu0 %v356
      %409 = vmatprep.subr.bf16.mxu0 0
      %410 = vmatpush1.bf16.msra.mxu0 0
      %411 = vmatprep.subr.bf16.mxu0 0
      %412 = vmatpush1.bf16.msra.mxu0 0
      %413 = vmatprep.subr.bf16.mxu0 0
      %414 = vmatpush1.bf16.msra.mxu0 0
      %415 = vmatprep.subr.bf16.mxu0 0
      %416 = vmatpush1.bf16.msra.mxu0 0
      %417 = vmatprep.mubr.bf16.mxu0 %v383
      %418 = vmatmul.mubr.bf16.gmra.mrb[0].mxu0 %v224
      %v419 = vpop.f32.mrb[0].mxu0
      %v420 = vadd.f32 %v255, %v419
      %v421 = vpop.f32.mrb[0].mxu0
      %v422 = vadd.f32 %v259, %v421
      %v423 = vpop.f32.mrb[0].mxu0
      %v424 = vadd.f32 %v255, %v423
      %v425 = vpop.f32.mrb[0].mxu0
      %v426 = vadd.f32 %v259, %v425
      %427 = vdwg.mxu0
      %s428 = sld [smem:[#allocation3]]
      %vm429 = vcmp.gt.f32.partialorder %v420, 0.0
      %vm430 = vcmp.gt.f32.partialorder %v422, 0.0
      %vm431 = vcmp.gt.f32.partialorder %v424, 0.0
      %vm432 = vcmp.gt.f32.partialorder %v426, 0.0
      %v433 = vstv %s428
      %v434 = vmul.f32 %v433, %v420
      %v435 = vmul.f32 %v433, %v422
      %v436 = vmul.f32 %v433, %v424
      %v437 = vmul.f32 %v433, %v426
      %v438 = vsel %vm429, %v420, %v434
      %v439 = vsel %vm430, %v422, %v435
      %v440 = vsel %vm431, %v424, %v436
      %v441 = vsel %vm432, %v426, %v437
      %442 = vst [vmem:[%s198] sm:$0xff] %v438
      %443 = vst [vmem:[%s198 + $0x8] sm:$0xff] %v439
      %444 = vst [vmem:[%s198 + $0x10] sm:$0xff] %v440
      %445 = vst [vmem:[%s198 + $0x18] sm:$0xff] %v441
      %p446 = scmp.lt.s32.totalorder %s16, 1
      %s447 = scalar_select %p446, %s16, 1
      %s448 = smul.addr %s447, 4
      %s449 = smul.addr %s448, 8
      %s450 = scalar_lea.vmem %s4, %s449
      // Predicated region
      $region37: #{upsampling_block.1} parent=35 // pred_check
        %p451 = pneg %p123
      $region38: #{upsampling_block.1} parent=35 // pred_check_branch
        %453 = sbr.rel (%p451) target = $region40
      $region39: #{upsampling_block.1} parent=35 // pred_region
        _
      $region40: #{upsampling_block.1} parent=35 // pred_fallthru
        _
    $region36: #{upsampling_block.1} parent=5 // pred_fallthru
      _
    %p454 = scmp.le.s32.totalorder 2, %s11
    // Predicated region
    $region41: #{upsampling_block.1} parent=5 // pred_check
      %p455 = pneg %p454
    $region42: #{upsampling_block.1} parent=5 // pred_check_branch
      %457 = sbr.rel (%p455) target = $region44
    $region43: #{upsampling_block.1} parent=5 // pred_region
      %s458 = ssub.s32 %s11, 2
      // Predicated region
      $region45: #{upsampling_block.1} parent=43 // pred_check
        %p459 = pneg %p129
      $region46: #{upsampling_block.1} parent=43 // pred_check_branch
        %461 = sbr.rel (%p459) target = $region48
      $region47: #{upsampling_block.1} parent=43 // pred_region
        %p462 = scmp.lt.s32.totalorder %s17, 1
        %s463 = scalar_select %p462, %s17, 1
        %s464 = smul.addr %s463, 4
        %s465 = smul.addr %s464, 8
        %s466 = scalar_lea.vmem %s4, %s465
      $region48: #{upsampling_block.1} parent=43 // pred_fallthru
        _
    $region44: #{upsampling_block.1} parent=5 // pred_fallthru
      _
  $region6: #{upsampling_block.1} parent=0 // loop_footer
    %s15 = sadd.s32 1, %s11
  $region7: #{upsampling_block.1} parent=0 // loop_footer_branch
    %10 = sbr.rel target = $region3
  $region8: #{upsampling_block.1} parent=0 // loop_exit
    _

</llo_original>
